<compile_context>
chip_gen: v6e
topology: v6e:2x2x1
jax: 0.10.0
libtpu: 0.0.40
codegen_flags: <defaults>
</compile_context>

<pallas_src>
import jax
import jax.numpy as jnp
from jax.experimental import pallas as pl
from jax.experimental.pallas import tpu as pltpu


def _make_focal_kernel(batch_size, gamma):
    gamma_f = float(gamma)

    def kernel(preds_ref, labels_ref, out_ref, acc_ref):
        # ---- init resident accumulator on the first batch tile ----
        @pl.when(pl.program_id(0) == 0)
        def _init():
            acc_ref[...] = jnp.zeros_like(acc_ref)

        x = preds_ref[...].astype(jnp.float32)      # [C, TB]: classes on sublanes, batch on lanes
        labels = labels_ref[...]                    # [1, TB] int32, lane-major

        # ---- numerically stable log-softmax over the class (sublane) axis ----
        m = jnp.max(x, axis=0, keepdims=True)       # [1, TB]
        z = x - m
        lse = jnp.log(jnp.sum(jnp.exp(z), axis=0, keepdims=True))
        logp = z - lse                              # [C, TB] log-probabilities

        # ---- pick log p(label) per column (no one-hot materialization) ----
        row = jax.lax.broadcasted_iota(jnp.int32, logp.shape, 0)
        picked = jnp.where(row == labels, logp, 0.0)            # padded lanes: label=-1 -> 0
        tile_sum = jnp.sum(jnp.sum(picked, axis=0, keepdims=True),
                           axis=1, keepdims=True)               # (1, 1)
        acc_ref[...] += tile_sum                                # running sum of log p(label)

        # ---- finalize: mean -> logpt, focal transform ----
        @pl.when(pl.program_id(0) == pl.num_programs(0) - 1)
        def _finalize():
            logpt = acc_ref[...] * jnp.float32(1.0 / batch_size)  # == -cross_entropy (mean)
            pt = jnp.exp(logpt)
            q = 1.0 - pt
            if gamma_f == 0.0:
                qg = jnp.ones_like(q)
            elif gamma_f.is_integer() and 1.0 <= gamma_f <= 8.0:
                # integer gamma: repeated multiply (VPU) instead of generic pow (EUP exp/log)
                qg = q
                for _ in range(int(gamma_f) - 1):
                    qg = qg * q
            else:
                qg = q ** jnp.float32(gamma_f)
            out_ref[...] = -qg * logpt              # scalar focal, shape (1, 1)

    return kernel


def focal_loss_pallas(preds, labels, alpha_vec, gamma=2.0, tile_b=1024):
    """preds: [B, C] (any float dtype); labels: [B] int; alpha_vec: [C] -> [C] f32 loss."""
    B, C = preds.shape
    itemsize = jnp.dtype(preds.dtype).itemsize

    # Lane-dense layout: batch -> 128-wide lane axis, classes -> sublanes.
    preds_t = preds.T                                       # [C, B], native dtype (no f32 cast)
    labels_row = labels.reshape(1, B).astype(jnp.int32)     # [1, B] lane-major

    # Tile the batch axis; cap the tile so (double-buffered) preds tile stays well under
    # the scoped-VMEM budget on all generations (v5e 16 MiB default, v7x 64 MiB physical).
    max_tb = max(128, ((4 * 1024 * 1024) // (max(C, 1) * itemsize)) // 128 * 128)
    TB = max(128, min(int(tile_b), max_tb, ((B + 127) // 128) * 128))
    Bp = ((B + TB - 1) // TB) * TB
    pad = Bp - B
    if pad:
        preds_t = jnp.pad(preds_t, ((0, 0), (0, pad)))
        labels_row = jnp.pad(labels_row, ((0, 0), (0, pad)), constant_values=-1)

    focal = pl.pallas_call(
        _make_focal_kernel(B, gamma),
        out_shape=jax.ShapeDtypeStruct((1, 1), jnp.float32),
        grid_spec=pltpu.PrefetchScalarGridSpec(
            num_scalar_prefetch=0,
            grid=(Bp // TB,),
            in_specs=[
                pl.BlockSpec((C, TB), lambda i: (0, i)),    # preds tile [C, TB]
                pl.BlockSpec((1, TB), lambda i: (0, i)),    # labels tile [1, TB]
            ],
            out_specs=pl.BlockSpec((1, 1), lambda i: (0, 0)),  # resident scalar output
            scratch_shapes=[pltpu.VMEM((1, 1), jnp.float32)],  # running sum accumulator
        ),
        compiler_params=pltpu.CompilerParams(
            dimension_semantics=("arbitrary",),             # reduction axis, output resident
        ),
    )(preds_t, labels_row)

    # Alpha weighting: trivial O(C) epilogue on the scalar focal (keeps kernel output (1,1)).
    return alpha_vec.astype(jnp.float32) * focal[0, 0]


def focal_loss_ref(preds, labels, alpha_vec, gamma=2.0):
    """Pure-JAX reference mirroring the PyTorch module."""
    logp = jax.nn.log_softmax(preds.astype(jnp.float32), axis=-1)
    logpt_rows = jnp.take_along_axis(logp, labels[:, None].astype(jnp.int32), axis=-1)[:, 0]
    ce = -jnp.mean(logpt_rows)
    logpt = -ce
    pt = jnp.exp(logpt)
    focal = -((1.0 - pt) ** gamma) * logpt
    return alpha_vec.astype(jnp.float32) * focal


if __name__ == "__main__":
    # Module parameters (as in __init__ with alpha=0.25, num_classes=2, gamma=2)
    alpha_scalar = 0.25
    gamma = 2.0
    num_classes = 2
    alpha_vec = jnp.concatenate(
        [jnp.array([alpha_scalar], jnp.float32),
         jnp.full((num_classes - 1,), 1.0 - alpha_scalar, jnp.float32)]
    )

    key = jax.random.PRNGKey(0)

    # --- test 1: small batch (single tile, lane padding path) ---
    B1 = 8
    k1p, k1l, key = (*jax.random.split(key, 2), key)
    k1p, k1l = jax.random.split(jax.random.PRNGKey(0))
    preds1 = jax.random.normal(k1p, (B1, num_classes), dtype=jnp.float32)
    labels1 = jax.random.randint(k1l, (B1,), 0, num_classes, dtype=jnp.int32)
    loss1 = jax.block_until_ready(focal_loss_pallas(preds1, labels1, alpha_vec, gamma=gamma))
    ref1 = focal_loss_ref(preds1, labels1, alpha_vec, gamma=gamma)
    assert loss1.shape == (num_classes,)
    assert jnp.allclose(loss1, ref1, rtol=1e-4, atol=1e-6), (loss1, ref1)

    # --- test 2: larger batch (multi-tile grid + tail padding path) ---
    B2 = 3000
    k2p, k2l = jax.random.split(jax.random.PRNGKey(1))
    preds2 = jax.random.normal(k2p, (B2, num_classes), dtype=jnp.float32)
    labels2 = jax.random.randint(k2l, (B2,), 0, num_classes, dtype=jnp.int32)
    loss2 = jax.block_until_ready(focal_loss_pallas(preds2, labels2, alpha_vec, gamma=gamma))
    ref2 = focal_loss_ref(preds2, labels2, alpha_vec, gamma=gamma)
    assert loss2.shape == (num_classes,)
    assert jnp.allclose(loss2, ref2, rtol=1e-4, atol=1e-6), (loss2, ref2)

    print("KERNEL_OK")
</pallas_src>

<mosaic_0001>
module attributes {stable_mosaic.version = 11 : i64} {
  func.func @kernel(%arg0: i32, %arg1: memref<2x128xf32, #tpu.memory_space<vmem>>, %arg2: memref<1x128xi32, #tpu.memory_space<vmem>>, %arg3: memref<1x1xf32, #tpu.memory_space<vmem>>, %arg4: memref<1x1xf32, #tpu.memory_space<vmem>>) attributes {dimension_semantics = [#tpu.dimension_semantics<arbitrary>], iteration_bounds = array<i64: 1>, scalar_prefetch = 0 : i64, scratch_operands = 1 : i64, tpu.core_type = #tpu.core_type<tc>, window_params = [{transform_indices = @transform_0, window_bounds = array<i64: 2, 128>}, {transform_indices = @transform_1, window_bounds = array<i64: 1, 128>}, {pipeline_mode = #tpu.pipeline_mode<synchronous>, transform_indices = @transform_2, window_bounds = array<i64: 1, 1>}]} {
    %c0_i32 = arith.constant 0 : i32
    %0 = arith.cmpi eq, %arg0, %c0_i32 : i32
    %1 = arith.extui %0 : i1 to i32
    %c0_i32_0 = arith.constant 0 : i32
    %2 = arith.cmpi ne, %1, %c0_i32_0 : i32
    scf.if %2 {
      %cst_14 = arith.constant 0.000000e+00 : f32
      %30 = vector.broadcast %cst_14 : f32 to vector<1x1xf32>
      %c0_15 = arith.constant 0 : index
      %c0_16 = arith.constant 0 : index
      %31 = vector.load %arg4[%c0_15, %c0_16] : memref<1x1xf32, #tpu.memory_space<vmem>>, vector<1x1xf32>
      tpu.vector_store %arg4[%c0_15, %c0_16], %30 {strides = array<i32>} : memref<1x1xf32, #tpu.memory_space<vmem>>, vector<1x1xf32>,
    } else {
    }
    %c0 = arith.constant 0 : index
    %c0_1 = arith.constant 0 : index
    %3 = vector.load %arg1[%c0, %c0_1] : memref<2x128xf32, #tpu.memory_space<vmem>>, vector<2x128xf32>
    %c0_2 = arith.constant 0 : index
    %c0_3 = arith.constant 0 : index
    %4 = vector.load %arg2[%c0_2, %c0_3] : memref<1x128xi32, #tpu.memory_space<vmem>>, vector<1x128xi32>
    %cst = arith.constant dense<0xFF800000> : vector<128xf32>
    %5 = vector.multi_reduction <maximumf>, %3, %cst [0] : vector<2x128xf32> to vector<128xf32>
    %6 = vector.shape_cast %5 : vector<128xf32> to vector<1x128xf32>
    %7 = vector.broadcast %6 : vector<1x128xf32> to vector<2x128xf32>
    %8 = arith.subf %3, %7 : vector<2x128xf32>
    %9 = math.exp %8 : vector<2x128xf32>
    %cst_4 = arith.constant dense<0.000000e+00> : vector<128xf32>
    %10 = vector.multi_reduction <add>, %9, %cst_4 [0] : vector<2x128xf32> to vector<128xf32>
    %11 = vector.shape_cast %10 : vector<128xf32> to vector<1x128xf32>
    %12 = math.log %11 : vector<1x128xf32>
    %13 = vector.broadcast %12 : vector<1x128xf32> to vector<2x128xf32>
    %14 = arith.subf %8, %13 : vector<2x128xf32>
    %15 = tpu.iota {dimensions = array<i32: 0>} : vector<2x128xi32>
    %16 = vector.broadcast %4 : vector<1x128xi32> to vector<2x128xi32>
    %17 = arith.cmpi eq, %15, %16 : vector<2x128xi32>
    %cst_5 = arith.constant 0.000000e+00 : f32
    %18 = vector.broadcast %cst_5 : f32 to vector<2x128xf32>
    %19 = arith.select %17, %14, %18 : vector<2x128xi1>, vector<2x128xf32>
    %cst_6 = arith.constant dense<0.000000e+00> : vector<128xf32>
    %20 = vector.multi_reduction <add>, %19, %cst_6 [0] : vector<2x128xf32> to vector<128xf32>
    %21 = vector.shape_cast %20 : vector<128xf32> to vector<1x128xf32>
    %cst_7 = arith.constant dense<0.000000e+00> : vector<1xf32>
    %22 = vector.multi_reduction <add>, %21, %cst_7 [1] : vector<1x128xf32> to vector<1xf32>
    %23 = vector.shape_cast %22 : vector<1xf32> to vector<1x1xf32>
    %c0_8 = arith.constant 0 : index
    %c0_9 = arith.constant 0 : index
    %24 = vector.load %arg4[%c0_8, %c0_9] : memref<1x1xf32, #tpu.memory_space<vmem>>, vector<1x1xf32>
    %25 = arith.addf %24, %23 : vector<1x1xf32>
    %c0_10 = arith.constant 0 : index
    %c0_11 = arith.constant 0 : index
    %26 = vector.load %arg4[%c0_10, %c0_11] : memref<1x1xf32, #tpu.memory_space<vmem>>, vector<1x1xf32>
    tpu.vector_store %arg4[%c0_10, %c0_11], %25 {strides = array<i32>} : memref<1x1xf32, #tpu.memory_space<vmem>>, vector<1x1xf32>,
    %c0_i32_12 = arith.constant 0 : i32
    %27 = arith.cmpi eq, %arg0, %c0_i32_12 : i32
    %28 = arith.extui %27 : i1 to i32
    %c0_i32_13 = arith.constant 0 : i32
    %29 = arith.cmpi ne, %28, %c0_i32_13 : i32
    scf.if %29 {
      %c0_14 = arith.constant 0 : index
      %c0_15 = arith.constant 0 : index
      %30 = vector.load %arg4[%c0_14, %c0_15] : memref<1x1xf32, #tpu.memory_space<vmem>>, vector<1x1xf32>
      %cst_16 = arith.constant 1.250000e-01 : f32
      %31 = vector.broadcast %cst_16 : f32 to vector<1x1xf32>
      %32 = arith.mulf %30, %31 : vector<1x1xf32>
      %33 = math.exp %32 : vector<1x1xf32>
      %cst_17 = arith.constant 1.000000e+00 : f32
      %34 = vector.broadcast %cst_17 : f32 to vector<1x1xf32>
      %35 = arith.subf %34, %33 : vector<1x1xf32>
      %36 = arith.mulf %35, %35 : vector<1x1xf32>
      %cst_18 = arith.constant 0.000000e+00 : f32
      %37 = vector.broadcast %cst_18 : f32 to vector<1x1xf32>
      %38 = arith.subf %37, %36 : vector<1x1xf32>
      %39 = arith.mulf %38, %32 : vector<1x1xf32>
      %c0_19 = arith.constant 0 : index
      %c0_20 = arith.constant 0 : index
      %40 = vector.load %arg3[%c0_19, %c0_20] : memref<1x1xf32, #tpu.memory_space<vmem>>, vector<1x1xf32>
      tpu.vector_store %arg3[%c0_19, %c0_20], %39 {strides = array<i32>} : memref<1x1xf32, #tpu.memory_space<vmem>>, vector<1x1xf32>,
    } else {
    }
    return
  }
  func.func @transform_0(%arg0: i32) -> (i32, i32) {
    %c0_i32 = arith.constant 0 : i32
    %c0_i32_0 = arith.constant 0 : i32
    return %c0_i32, %arg0 : i32, i32
  }
  func.func @transform_1(%arg0: i32) -> (i32, i32) {
    %c0_i32 = arith.constant 0 : i32
    %c0_i32_0 = arith.constant 0 : i32
    return %c0_i32, %arg0 : i32, i32
  }
  func.func @transform_2(%arg0: i32) -> (i32, i32) {
    %c0_i32 = arith.constant 0 : i32
    %c0_i32_0 = arith.constant 0 : i32
    %c0_i32_1 = arith.constant 0 : i32
    return %c0_i32, %c0_i32_0 : i32, i32
  }
}

</mosaic_0001>

<llo_original>
// kernel: tpu_custom_call.1
$region0: #{tpu_custom_call.1}
  #allocation0 [shape = 'u32[]', space=smem, size = 0x4, offset = 0x4, fixed_abs, tag = 'smem constant byte address 0x4 - core index']
  #allocation1 [shape = 'u32[144,128]{1,0:T(1,128)}', space=vmem, size = 0x12000, scoped, tag = 'internal scratch']
  #allocation2 [shape = 'f32[1,1]{1,0:T(1,128)}', space=vmem, size = 0x200, scoped, tag = 'scratch operand']
  %s0 = inlined_call_operand.hbm [shape: f32[2,128], index: 0, kind: input, shape index: {}]
  %s1 = inlined_call_operand.vmem [shape: s32[1,128], index: 1, kind: input, shape index: {}]
  %s2 = inlined_call_operand.hbm [shape: f32[1,1], index: 2, kind: output, shape index: {}]
  %s3 = sld [smem:[#allocation0]]
  $region30: #{tpu_custom_call.1} parent=0
    _
  %s5 = ssub.s32 1, %s3
  %s6 = scalar_select 0, %s5, %s3
  $region1: #{tpu_custom_call.1} parent=0
    #allocation3 [shape = 'u8[1024]{0}', space=vmem, size = 0x400, scoped, tag = 'input window, operand 0, single buffered']
    #allocation4 [shape = 's32[1]{0}', space=sflag, size = 0x4, scoped, tag = 'scoped memory for tpu_custom_call.1']
    #allocation5 [shape = 's32[1]{0}', space=sflag, size = 0x4, scoped, tag = 'scoped memory for tpu_custom_call.1']
    #allocation6 [shape = 'u8[512]{0}', space=vmem, size = 0x400, scoped, tag = 'output window, operand 0, single buffered']
    %7 = vsyncpa [#allocation4], 0
    %8 = vsyncpa [#allocation5], 0
    // Predicated region
    $region2: #{tpu_custom_call.1} parent=1 // pred_check
      _
    $region3: #{tpu_custom_call.1} parent=1 // pred_check_branch
      %10 = sbr.rel (0) target = $region5
    $region4: #{tpu_custom_call.1} parent=1 // pred_region
      %s12 = ssub.s32 32, 32
      %13 = vsyncadd [#allocation4], %s12
      %s15 = sshll.u32 [#allocation3], 4
      %s16 = int_to_ptr.vmem [resolvable:$true] %s15
      %18 = dma.hbm_to_vmem [thread:$0]  %s0, 32, %s16, [#allocation4]
    $region5: #{tpu_custom_call.1} parent=1 // pred_fallthru
      _
    // Predicated region
    $region6: #{tpu_custom_call.1} parent=1 // pred_check
      _
    $region7: #{tpu_custom_call.1} parent=1 // pred_check_branch
      %20 = sbr.rel (0) target = $region9
    $region8: #{tpu_custom_call.1} parent=1 // pred_region
      _
    $region9: #{tpu_custom_call.1} parent=1 // pred_fallthru
      _
    // Predicated region
    $region10: #{tpu_custom_call.1} parent=1 // pred_check
      _
    $region11: #{tpu_custom_call.1} parent=1 // pred_check_branch
      %22 = sbr.rel (0) target = $region13
    $region12: #{tpu_custom_call.1} parent=1 // pred_region
      %23 = dma.done [#allocation4], 32
    $region13: #{tpu_custom_call.1} parent=1 // pred_fallthru
      _
    %p24 = scmp.eq.s32.totalorder 0, 0
    // Predicated region
    $region14: #{tpu_custom_call.1} parent=1 // pred_check
      %p25 = pneg %p24
    $region15: #{tpu_custom_call.1} parent=1 // pred_check_branch
      %27 = sbr.rel (%p25) target = $region17
    $region16: #{tpu_custom_call.1} parent=1 // pred_region
      %vm28 = vcmask 0
      %29 = vst.msk [vmem:[#allocation2] sm:$0x1] %vm28, 0.0
    $region17: #{tpu_custom_call.1} parent=1 // pred_fallthru
      _
    %v30 = vld [vmem:[#allocation3] sm:$0x3]
    %v31 = vld [vmem:[%s1] sm:$0x1]
    %vm32 = vcmask 1041408
    %v33 = vsel %vm32, %v30, -inf
    %v34 = vrot.slane %v33, 4
    %v35 = vmax.f32 %v33, %v34
    %v36 = vrot.slane %v35, 2
    %v37 = vmax.f32 %v35, %v36
    %v38 = vrot.slane %v37, 1
    %v39 = vmax.f32 %v37, %v38
    %v40 = vsub.f32 %v30, %v39
    %v41 = vmul.f32 %v40, 1.442695
    %v42 = vpow.pop %v41
    %v43 = vsel %vm32, %v42, 0.0
    %v44 = vrot.slane %v43, 4
    %v45 = vadd.f32 %v43, %v44
    %v46 = vrot.slane %v45, 2
    %v47 = vadd.f32 %v45, %v46
    %v48 = vrot.slane %v47, 1
    %v49 = vadd.f32 %v47, %v48
    %v50 = vlog2.pop %v49
    %v51 = vmul.f32 %v50, 0.6931472
    %v52 = vsub.f32 %v40, %v51
    %v53 = vlaneseq
    %v54 = vshrl.u32 %v53, 7
    %v55 = vlaneseq
    %v56 = vshrl.u32 %v55, 7
    %v57 = vsub.s32 0, %v56
    %v58 = vrot.slane %v31, %v57
    %vm59 = vcmp.eq.s32.totalorder %v54, %v58
    %v60 = vsel %vm59, %v52, 0.0
    %v61 = vsel %vm32, %v60, 0.0
    %v62 = vrot.slane %v61, 4
    %v63 = vadd.f32 %v61, %v62
    %v64 = vrot.slane %v63, 2
    %v65 = vadd.f32 %v63, %v64
    %v66 = vrot.slane %v65, 1
    %v67 = vadd.f32 %v65, %v66
    %68 = vadd.xlane.f32.xlu0 %v67
    %v69 = vpop.xlane.xlu0 %68
    %v70 = vld [vmem:[#allocation2] sm:$0x1]
    %v71 = vadd.f32 %v70, %v69
    %vm72 = vcmask 0
    %73 = vst.msk [vmem:[#allocation2] sm:$0x1] %vm72, %v71
    // Predicated region
    $region18: #{tpu_custom_call.1} parent=1 // pred_check
      %p74 = pneg %p24
    $region19: #{tpu_custom_call.1} parent=1 // pred_check_branch
      %76 = sbr.rel (%p74) target = $region21
    $region20: #{tpu_custom_call.1} parent=1 // pred_region
      %v77 = vld [vmem:[#allocation2] sm:$0x1]
      %v78 = vmul.f32 %v77, 0.125
      %v79 = vmul.f32 %v78, 1.442695
      %v80 = vpow.pop %v79
      %v81 = vsub.f32 1.0, %v80
      %v82 = vmul.f32 %v81, %v81
      %v83 = vsub.f32 0.0, %v82
      %v84 = vmul.f32 %v83, %v78
      %85 = vst.msk [vmem:[#allocation6] sm:$0x1] %vm72, %v84
    $region21: #{tpu_custom_call.1} parent=1 // pred_fallthru
      _
    // Predicated region
    $region22: #{tpu_custom_call.1} parent=1 // pred_check
      _
    $region23: #{tpu_custom_call.1} parent=1 // pred_check_branch
      %87 = sbr.rel (0) target = $region25
    $region24: #{tpu_custom_call.1} parent=1 // pred_region
      %s89 = ssub.s32 16, 16
      %90 = vsyncadd [#allocation5], %s89
      %s92 = sshll.u32 [#allocation6], 4
      %s93 = int_to_ptr.vmem [resolvable:$true] %s92
      %95 = dma.vmem_to_hbm [thread:$0]  %s93, 16, %s2, [#allocation5]
    $region25: #{tpu_custom_call.1} parent=1 // pred_fallthru
      _
    // Predicated region
    $region26: #{tpu_custom_call.1} parent=1 // pred_check
      _
    $region27: #{tpu_custom_call.1} parent=1 // pred_check_branch
      %97 = sbr.rel (0) target = $region29
    $region28: #{tpu_custom_call.1} parent=1 // pred_region
      %98 = dma.done [#allocation5], 16
    $region29: #{tpu_custom_call.1} parent=1 // pred_fallthru
      _
    %99 = vsyncpa [#allocation4], 1
    %100 = vsyncpa [#allocation5], 1

</llo_original>
